<compile_context>
chip_gen: v5e
topology: v5e:2x2
jax: 0.10.0
libtpu: 0.0.40
codegen_flags: <defaults>
</compile_context>

<pallas_src>
import functools

import jax
import jax.numpy as jnp
from jax.experimental import pallas as pl
from jax.experimental.pallas import tpu as pltpu

LANE = 128
SUB = 8
VMEM_LIMIT = 48 * 1024 * 1024           # safe on v7x (64 MiB physical); v5e/v6e have 128 MiB
FUSED_WEIGHT_BUDGET = 24 * 1024 * 1024  # fused path keeps all weights VMEM-resident


def _round_up(n, m):
    return (n + m - 1) // m * m


def _sublane(dtype):
    return 16 if dtype == jnp.bfloat16 else 8


def _pad2(a, rows, cols):
    pr, pc = rows - a.shape[0], cols - a.shape[1]
    if pr == 0 and pc == 0:
        return a
    return jnp.pad(a, ((0, pr), (0, pc)))


def _choose_tile_m(B, max_tile, min_steps, sub):
    # At least `min_steps` grid steps so each v7x TensorCore gets >= min_steps/2 pipelined
    # steps of DMA/compute overlap, while keeping the tile a clean sublane multiple.
    tile = _round_up(pl.cdiv(B, min_steps), sub)
    return int(min(max_tile, max(sub, tile)))


# ---------------------------------------------------------------------------
# Fused kernel: whole 3-layer MLP on one batch tile; weights stay VMEM-resident.
# ---------------------------------------------------------------------------
def _mlp_kernel(x_ref, w1_ref, b1_ref, w2_ref, b2_ref, w3_ref, b3_ref, o_ref):
    cdt = w1_ref.dtype  # MXU operand dtype (bf16 by default); accumulation stays f32.
    # fc1 + ReLU   (dropout = identity in eval mode)
    h = jnp.dot(x_ref[...], w1_ref[...], preferred_element_type=jnp.float32)
    h = jnp.maximum(h + b1_ref[...], 0.0)
    # fc2 + ReLU   (dropout = identity in eval mode)
    h = jnp.dot(h.astype(cdt), w2_ref[...], preferred_element_type=jnp.float32)
    h = jnp.maximum(h + b2_ref[...], 0.0)
    # fc3
    out = jnp.dot(h.astype(cdt), w3_ref[...], preferred_element_type=jnp.float32) + b3_ref[...]
    o_ref[...] = out.astype(o_ref.dtype)


# ---------------------------------------------------------------------------
# Layer-wise fallback: one (batch, out-feature)-tiled linear(+ReLU) kernel per layer.
# ---------------------------------------------------------------------------
def _linear_kernel(x_ref, w_ref, b_ref, o_ref, *, relu):
    r = jnp.dot(x_ref[...], w_ref[...], preferred_element_type=jnp.float32) + b_ref[...]
    if relu:
        r = jnp.maximum(r, 0.0)
    o_ref[...] = r.astype(o_ref.dtype)


def _linear_tiled(x, w, b, *, relu, out_dtype, tile_m, tn_max=512):
    """y = relu?(x @ w + b); grid over (batch tiles, out-feature tiles), full-K blocks."""
    M, K = x.shape
    N = w.shape[1]
    cdt = x.dtype
    sub = _sublane(cdt)

    tm = min(tile_m, _round_up(M, sub))
    Mp = _round_up(M, tm)
    Kp = _round_up(K, sub)
    if N < LANE:
        Np, tn = N, N                          # narrow output: full-dim block (masked vst)
    else:
        tn = min(tn_max, _round_up(N, LANE))
        Np = _round_up(N, tn)

    xp = _pad2(x, Mp, Kp)
    wp = _pad2(w, Kp, Np).astype(cdt)
    bp = _pad2(b, 1, Np).astype(jnp.float32)

    csize = jnp.dtype(cdt).itemsize
    flops = 2 * Mp * Kp * Np
    bytes_accessed = int((Mp * Kp + Kp * Np) * csize + Np * 4
                         + Mp * Np * jnp.dtype(out_dtype).itemsize)

    out = pl.pallas_call(
        functools.partial(_linear_kernel, relu=relu),
        out_shape=jax.ShapeDtypeStruct((Mp, Np), out_dtype),
        grid_spec=pltpu.PrefetchScalarGridSpec(
            num_scalar_prefetch=0,
            grid=(Mp // tm, Np // tn),
            in_specs=[
                pl.BlockSpec((tm, Kp), lambda i, j: (i, 0)),
                pl.BlockSpec((Kp, tn), lambda i, j: (0, j)),
                pl.BlockSpec((1, tn), lambda i, j: (0, j)),
            ],
            out_specs=pl.BlockSpec((tm, tn), lambda i, j: (i, j)),
        ),
        compiler_params=pltpu.CompilerParams(
            dimension_semantics=("parallel", "parallel"),
            vmem_limit_bytes=VMEM_LIMIT,
        ),
        cost_estimate=pl.CostEstimate(flops=flops, transcendentals=0,
                                      bytes_accessed=bytes_accessed),
    )(xp, wp, bp)
    return out[:M, :N]


# ---------------------------------------------------------------------------
# Forward wrapper
# ---------------------------------------------------------------------------
def mlp_forward(x, w1, b1, w2, b2, w3, b3, *, use_bf16=True, max_tile_m=1024,
                min_grid_steps=8, small_batch_max=256, force_layerwise=False):
    """x: [B, in_dim]; w*: [in, out]; b*: [1, out]. Returns [B, out_dim] float32."""
    B, in_dim = x.shape
    hid = w1.shape[1]
    out_dim = w3.shape[1]

    cdt = jnp.bfloat16 if use_bf16 else jnp.float32
    csize = jnp.dtype(cdt).itemsize
    sub = _sublane(cdt)

    Kp = _round_up(in_dim, sub)      # sublane-only padding; x BlockSpec last dim == full dim
    Hp = _round_up(hid, LANE)        # hidden stays lane-dense (weights read once / resident)

    x_c = x.astype(cdt)

    # The fused path holds w1/w2/w3 fully VMEM-resident across all grid steps; fall back to a
    # per-layer schedule when that footprint stops fitting comfortably (matters on v7x: 64 MiB).
    weight_bytes = (Kp * Hp + Hp * Hp + Hp * out_dim) * csize
    if force_layerwise or weight_bytes > FUSED_WEIGHT_BUDGET:
        # TODO(synk): add a K-reduction grid axis for hidden_dim beyond ~8k where full-K
        # blocks no longer fit VMEM.
        tile_m = _choose_tile_m(B, max_tile_m, min_grid_steps, sub)
        h = _linear_tiled(x_c, w1, b1, relu=True, out_dtype=cdt, tile_m=tile_m)
        h = _linear_tiled(h, w2, b2, relu=True, out_dtype=cdt, tile_m=tile_m)
        return _linear_tiled(h, w3, b3, relu=False, out_dtype=jnp.float32, tile_m=tile_m)

    # Zero-pad weights/biases (preserves exact semantics: padded hidden units stay 0 through
    # bias/ReLU). Weights carry the compute dtype; biases stay f32 for the f32 epilogue.
    w1p = _pad2(w1, Kp, Hp).astype(cdt)
    w2p = _pad2(w2, Hp, Hp).astype(cdt)
    w3p = _pad2(w3, Hp, out_dim).astype(cdt)
    b1p = _pad2(b1, 1, Hp).astype(jnp.float32)
    b2p = _pad2(b2, 1, Hp).astype(jnp.float32)
    b3p = _pad2(b3, 1, out_dim).astype(jnp.float32)

    def _fused_cost(Bp):
        flops = 2 * Bp * (Kp * Hp + Hp * Hp + Hp * out_dim)
        bytes_accessed = int(Bp * Kp * csize + weight_bytes
                             + (2 * Hp + out_dim) * 4 + Bp * out_dim * 4)
        return pl.CostEstimate(flops=flops, transcendentals=0, bytes_accessed=bytes_accessed)

    if B <= small_batch_max:
        # Small batch: single fused invocation, no grid, full-array VMEM refs.
        Bp = _round_up(B, sub)
        xp = _pad2(x_c, Bp, Kp)
        out_p = pl.pallas_call(
            _mlp_kernel,
            out_shape=jax.ShapeDtypeStruct((Bp, out_dim), jnp.float32),
            compiler_params=pltpu.CompilerParams(vmem_limit_bytes=VMEM_LIMIT),
            cost_estimate=_fused_cost(Bp),
        )(xp, w1p, b1p, w2p, b2p, w3p, b3p)
    else:
        # Large batch: tile over batch with >= min_grid_steps steps (>= min_grid_steps/2 per
        # v7x TensorCore); weights/biases use constant index_maps so they are fetched once and
        # stay VMEM-resident across grid steps.
        tile_m = _choose_tile_m(B, max_tile_m, min_grid_steps, sub)
        Bp = _round_up(B, tile_m)
        xp = _pad2(x_c, Bp, Kp)
        out_p = pl.pallas_call(
            _mlp_kernel,
            out_shape=jax.ShapeDtypeStruct((Bp, out_dim), jnp.float32),
            grid_spec=pltpu.PrefetchScalarGridSpec(
                num_scalar_prefetch=0,
                grid=(Bp // tile_m,),
                in_specs=[
                    pl.BlockSpec((tile_m, Kp), lambda i: (i, 0)),
                    pl.BlockSpec((Kp, Hp), lambda i: (0, 0)),
                    pl.BlockSpec((1, Hp), lambda i: (0, 0)),
                    pl.BlockSpec((Hp, Hp), lambda i: (0, 0)),
                    pl.BlockSpec((1, Hp), lambda i: (0, 0)),
                    pl.BlockSpec((Hp, out_dim), lambda i: (0, 0)),
                    pl.BlockSpec((1, out_dim), lambda i: (0, 0)),
                ],
                out_specs=pl.BlockSpec((tile_m, out_dim), lambda i: (i, 0)),
            ),
            compiler_params=pltpu.CompilerParams(
                dimension_semantics=("parallel",),
                vmem_limit_bytes=VMEM_LIMIT,
            ),
            cost_estimate=_fused_cost(Bp),
        )(xp, w1p, b1p, w2p, b2p, w3p, b3p)

    return out_p[:B, :]


def init_linear(key, in_dim, out_dim):
    # Matches PyTorch nn.Linear default init: U(-1/sqrt(in_dim), 1/sqrt(in_dim))
    kw, kb = jax.random.split(key)
    bound = 1.0 / jnp.sqrt(jnp.float32(in_dim))
    w = jax.random.uniform(kw, (in_dim, out_dim), jnp.float32, -bound, bound)
    b = jax.random.uniform(kb, (1, out_dim), jnp.float32, -bound, bound)
    return w, b


if __name__ == "__main__":
    input_dim, hidden_dim, output_dim = 16, 32, 2
    batch = 8

    key = jax.random.PRNGKey(0)
    kx, k1, k2, k3, kxl = jax.random.split(key, 5)

    x = jax.random.normal(kx, (batch, input_dim), jnp.float32)
    w1, b1 = init_linear(k1, input_dim, hidden_dim)
    w2, b2 = init_linear(k2, hidden_dim, hidden_dim)
    w3, b3 = init_linear(k3, hidden_dim, output_dim)

    def ref_fn(xv):
        h = jnp.maximum(xv @ w1 + b1, 0.0)
        h = jnp.maximum(h @ w2 + b2, 0.0)
        return h @ w3 + b3

    # jit the wrappers so weight padding / dtype casts are hoisted off the per-call path.
    fwd = jax.jit(lambda xv: mlp_forward(xv, w1, b1, w2, b2, w3, b3))                 # bf16 default
    fwd_f32 = jax.jit(lambda xv: mlp_forward(xv, w1, b1, w2, b2, w3, b3, use_bf16=False))
    fwd_layerwise = jax.jit(
        lambda xv: mlp_forward(xv, w1, b1, w2, b2, w3, b3, force_layerwise=True))

    # 1) exact f32 path, small batch (no-grid fused invocation)
    out_f32 = jax.block_until_ready(fwd_f32(x))
    assert out_f32.shape == (batch, output_dim)
    assert jnp.allclose(out_f32, ref_fn(x), atol=1e-5, rtol=1e-5)

    # 2) default bf16-operand path, small batch
    out_small = jax.block_until_ready(fwd(x))
    assert out_small.shape == (batch, output_dim)
    assert jnp.allclose(out_small, ref_fn(x), atol=5e-2, rtol=5e-2)

    # 3) large batch: batch-tiled grid (>= 8 steps), weights VMEM-resident, narrow output
    big_batch = 1024
    xl = jax.random.normal(kxl, (big_batch, input_dim), jnp.float32)
    out_big = jax.block_until_ready(fwd(xl))
    assert out_big.shape == (big_batch, output_dim)
    assert jnp.allclose(out_big, ref_fn(xl), atol=5e-2, rtol=5e-2)

    # 4) layer-wise fallback (auto-selected when hidden_dim is too large for resident weights)
    out_lw = jax.block_until_ready(fwd_layerwise(xl))
    assert out_lw.shape == (big_batch, output_dim)
    assert jnp.allclose(out_lw, ref_fn(xl), atol=5e-2, rtol=5e-2)

    print("KERNEL_OK")
</pallas_src>

<mosaic_0001>
module attributes {stable_mosaic.version = 11 : i64} {
  func.func @_mlp_kernel(%arg0: memref<8x16xf32, #tpu.memory_space<vmem>>, %arg1: memref<16x128xf32, #tpu.memory_space<vmem>>, %arg2: memref<1x128xf32, #tpu.memory_space<vmem>>, %arg3: memref<128x128xf32, #tpu.memory_space<vmem>>, %arg4: memref<1x128xf32, #tpu.memory_space<vmem>>, %arg5: memref<128x2xf32, #tpu.memory_space<vmem>>, %arg6: memref<1x2xf32, #tpu.memory_space<vmem>>, %arg7: memref<8x2xf32, #tpu.memory_space<vmem>>) attributes {dimension_semantics = [], scalar_prefetch = 0 : i64, scratch_operands = 0 : i64, tpu.core_type = #tpu.core_type<tc>} {
    %c0 = arith.constant 0 : index
    %c0_0 = arith.constant 0 : index
    %0 = vector.load %arg0[%c0, %c0_0] : memref<8x16xf32, #tpu.memory_space<vmem>>, vector<8x16xf32>
    %c0_1 = arith.constant 0 : index
    %c0_2 = arith.constant 0 : index
    %1 = vector.load %arg1[%c0_1, %c0_2] : memref<16x128xf32, #tpu.memory_space<vmem>>, vector<16x128xf32>
    %cst = arith.constant dense<0.000000e+00> : vector<8x128xf32>
    %2 = tpu.matmul %0, %1, %cst {dimension_numbers = #tpu.dot_dimension_numbers<[1], [0], [0], [1], [0, 0, 1, 1], [], []>} : vector<8x16xf32>, vector<16x128xf32>, vector<8x128xf32> -> vector<8x128xf32>
    %c0_3 = arith.constant 0 : index
    %c0_4 = arith.constant 0 : index
    %3 = vector.load %arg2[%c0_3, %c0_4] : memref<1x128xf32, #tpu.memory_space<vmem>>, vector<1x128xf32>
    %4 = vector.broadcast %3 : vector<1x128xf32> to vector<8x128xf32>
    %5 = arith.addf %2, %4 : vector<8x128xf32>
    %cst_5 = arith.constant 0.000000e+00 : f32
    %6 = vector.broadcast %cst_5 : f32 to vector<8x128xf32>
    %7 = arith.maximumf %5, %6 : vector<8x128xf32>
    %c0_6 = arith.constant 0 : index
    %c0_7 = arith.constant 0 : index
    %8 = vector.load %arg3[%c0_6, %c0_7] : memref<128x128xf32, #tpu.memory_space<vmem>>, vector<128x128xf32>
    %cst_8 = arith.constant dense<0.000000e+00> : vector<8x128xf32>
    %9 = tpu.matmul %7, %8, %cst_8 {dimension_numbers = #tpu.dot_dimension_numbers<[1], [0], [0], [1], [0, 0, 1, 1], [], []>} : vector<8x128xf32>, vector<128x128xf32>, vector<8x128xf32> -> vector<8x128xf32>
    %c0_9 = arith.constant 0 : index
    %c0_10 = arith.constant 0 : index
    %10 = vector.load %arg4[%c0_9, %c0_10] : memref<1x128xf32, #tpu.memory_space<vmem>>, vector<1x128xf32>
    %11 = vector.broadcast %10 : vector<1x128xf32> to vector<8x128xf32>
    %12 = arith.addf %9, %11 : vector<8x128xf32>
    %cst_11 = arith.constant 0.000000e+00 : f32
    %13 = vector.broadcast %cst_11 : f32 to vector<8x128xf32>
    %14 = arith.maximumf %12, %13 : vector<8x128xf32>
    %c0_12 = arith.constant 0 : index
    %c0_13 = arith.constant 0 : index
    %15 = vector.load %arg5[%c0_12, %c0_13] : memref<128x2xf32, #tpu.memory_space<vmem>>, vector<128x2xf32>
    %cst_14 = arith.constant dense<0.000000e+00> : vector<8x2xf32>
    %16 = tpu.matmul %14, %15, %cst_14 {dimension_numbers = #tpu.dot_dimension_numbers<[1], [0], [0], [1], [0, 0, 1, 1], [], []>} : vector<8x128xf32>, vector<128x2xf32>, vector<8x2xf32> -> vector<8x2xf32>
    %c0_15 = arith.constant 0 : index
    %c0_16 = arith.constant 0 : index
    %17 = vector.load %arg6[%c0_15, %c0_16] : memref<1x2xf32, #tpu.memory_space<vmem>>, vector<1x2xf32>
    %18 = vector.broadcast %17 : vector<1x2xf32> to vector<8x2xf32>
    %19 = arith.addf %16, %18 : vector<8x2xf32>
    %c0_17 = arith.constant 0 : index
    %c0_18 = arith.constant 0 : index
    %20 = vector.load %arg7[%c0_17, %c0_18] : memref<8x2xf32, #tpu.memory_space<vmem>>, vector<8x2xf32>
    tpu.vector_store %arg7[%c0_17, %c0_18], %19 {strides = array<i32>} : memref<8x2xf32, #tpu.memory_space<vmem>>, vector<8x2xf32>,
    return
  }
}

</mosaic_0001>

<llo_original>
// kernel: _lambda_.1
$region0: #{_lambda_.1}
  #allocation0 [shape = 'u32[]', space=smem, size = 0x4, offset = 0x4, fixed_abs, tag = 'smem constant byte address 0x4 - core index']
  #allocation1 [shape = 'u32[72,128]{1,0:T(1,128)}', space=vmem, size = 0x9000, scoped, tag = 'internal scratch']
  %s0 = inlined_call_operand.hbm [shape: f32[8,16], index: 0, kind: input, shape index: {}]
  %s1 = inlined_call_operand.hbm [shape: f32[16,128], index: 1, kind: input, shape index: {}]
  %s2 = inlined_call_operand.vmem [shape: f32[1,128], index: 2, kind: input, shape index: {}]
  %s3 = inlined_call_operand.hbm [shape: f32[128,128], index: 3, kind: input, shape index: {}]
  %s4 = inlined_call_operand.vmem [shape: f32[1,128], index: 4, kind: input, shape index: {}]
  %s5 = inlined_call_operand.hbm [shape: f32[128,2], index: 5, kind: input, shape index: {}]
  %s6 = inlined_call_operand.hbm [shape: f32[1,2], index: 6, kind: input, shape index: {}]
  %s7 = inlined_call_operand.vmem [shape: f32[8,2], index: 7, kind: output, shape index: {}]
  %s8 = sld [smem:[#allocation0]]
  $region58: #{_lambda_.1} parent=0
    _
  %s10 = ssub.s32 1, %s8
  %s11 = scalar_select 0, %s10, %s8
  $region1: #{_lambda_.1} parent=0
    #allocation2 [shape = 'u8[4096]{0}', space=vmem, size = 0x1000, scoped, tag = 'input window, operand 0, single buffered']
    #allocation3 [shape = 's32[1]{0}', space=sflag, size = 0x4, scoped, tag = 'scoped memory for _lambda_.1']
    #allocation4 [shape = 'u8[8192]{0}', space=vmem, size = 0x2000, scoped, tag = 'input window, operand 1, single buffered']
    #allocation5 [shape = 's32[1]{0}', space=sflag, size = 0x4, scoped, tag = 'scoped memory for _lambda_.1']
    #allocation6 [shape = 'u8[65536]{0}', space=vmem, size = 0x10000, scoped, tag = 'input window, operand 3, single buffered']
    #allocation7 [shape = 'u8[65536]{0}', space=vmem, size = 0x10000, scoped, tag = 'input window, operand 5, single buffered']
    #allocation8 [shape = 's32[1]{0}', space=sflag, size = 0x4, scoped, tag = 'scoped memory for _lambda_.1']
    #allocation9 [shape = 'u8[512]{0}', space=vmem, size = 0x400, scoped, tag = 'input window, operand 6, single buffered']
    %12 = vsyncpa [#allocation3], 0
    %13 = vsyncpa [#allocation5], 0
    %14 = vsyncpa [#allocation8], 0
    // Predicated region
    $region2: #{_lambda_.1} parent=1 // pred_check
      _
    $region3: #{_lambda_.1} parent=1 // pred_check_branch
      %16 = sbr.rel (0) target = $region5
    $region4: #{_lambda_.1} parent=1 // pred_region
      %18 = vsyncadd [#allocation3], 0
      %s20 = sshll.u32 %s0, 4
      %s21 = int_to_ptr.hbm [resolvable:$true] %s20
      %s22 = sshll.u32 [#allocation2], 4
      %s23 = int_to_ptr.vmem [resolvable:$true] %s22
      %25 = dma.hbm_to_vmem [thread:$0]  %s21, 128, %s23, [#allocation3]
    $region5: #{_lambda_.1} parent=1 // pred_fallthru
      _
    // Predicated region
    $region6: #{_lambda_.1} parent=1 // pred_check
      _
    $region7: #{_lambda_.1} parent=1 // pred_check_branch
      %27 = sbr.rel (0) target = $region9
    $region8: #{_lambda_.1} parent=1 // pred_region
      %29 = vsyncadd [#allocation5], 0
      %s30 = sshll.u32 %s1, 4
      %s31 = int_to_ptr.hbm [resolvable:$true] %s30
      %s32 = sshll.u32 [#allocation4], 4
      %s33 = int_to_ptr.vmem [resolvable:$true] %s32
      %38 = dma.hbm_to_vmem [thread:$0]  %s31, 256, %s33, [#allocation5], 128, 128, 8
    $region9: #{_lambda_.1} parent=1 // pred_fallthru
      _
    // Predicated region
    $region10: #{_lambda_.1} parent=1 // pred_check
      _
    $region11: #{_lambda_.1} parent=1 // pred_check_branch
      %40 = sbr.rel (0) target = $region13
    $region12: #{_lambda_.1} parent=1 // pred_region
      _
    $region13: #{_lambda_.1} parent=1 // pred_fallthru
      _
    // Predicated region
    $region14: #{_lambda_.1} parent=1 // pred_check
      _
    $region15: #{_lambda_.1} parent=1 // pred_check_branch
      %42 = sbr.rel (0) target = $region17
    $region16: #{_lambda_.1} parent=1 // pred_region
      %44 = vsyncadd [#allocation5], 0
      %s45 = sshll.u32 %s3, 4
      %s46 = int_to_ptr.hbm [resolvable:$true] %s45
      %s47 = sshll.u32 [#allocation6], 4
      %s48 = int_to_ptr.vmem [resolvable:$true] %s47
      %53 = dma.hbm_to_vmem [thread:$0]  %s46, 2048, %s48, [#allocation5], 128, 128, 8
    $region17: #{_lambda_.1} parent=1 // pred_fallthru
      _
    // Predicated region
    $region18: #{_lambda_.1} parent=1 // pred_check
      _
    $region19: #{_lambda_.1} parent=1 // pred_check_branch
      %55 = sbr.rel (0) target = $region21
    $region20: #{_lambda_.1} parent=1 // pred_region
      _
    $region21: #{_lambda_.1} parent=1 // pred_fallthru
      _
    // Predicated region
    $region22: #{_lambda_.1} parent=1 // pred_check
      _
    $region23: #{_lambda_.1} parent=1 // pred_check_branch
      %57 = sbr.rel (0) target = $region25
    $region24: #{_lambda_.1} parent=1 // pred_region
      %59 = vsyncadd [#allocation8], 0
      %s60 = sshll.u32 %s5, 4
      %s61 = int_to_ptr.hbm [resolvable:$true] %s60
      %s62 = sshll.u32 [#allocation7], 4
      %s63 = int_to_ptr.vmem [resolvable:$true] %s62
      %68 = dma.hbm_to_vmem [thread:$0]  %s61, 2048, %s63, [#allocation8], 128, 128, 8
    $region25: #{_lambda_.1} parent=1 // pred_fallthru
      _
    // Predicated region
    $region26: #{_lambda_.1} parent=1 // pred_check
      _
    $region27: #{_lambda_.1} parent=1 // pred_check_branch
      %70 = sbr.rel (0) target = $region29
    $region28: #{_lambda_.1} parent=1 // pred_region
      %72 = vsyncadd [#allocation8], 0
      %s74 = sshll.u32 %s6, 4
      %s75 = int_to_ptr.hbm [resolvable:$true] %s74
      %s76 = sshll.u32 [#allocation9], 4
      %s77 = int_to_ptr.vmem [resolvable:$true] %s76
      %79 = dma.hbm_to_vmem [thread:$0]  %s75, 16, %s77, [#allocation8]
    $region29: #{_lambda_.1} parent=1 // pred_fallthru
      _
    // Predicated region
    $region30: #{_lambda_.1} parent=1 // pred_check
      _
    $region31: #{_lambda_.1} parent=1 // pred_check_branch
      %81 = sbr.rel (0) target = $region33
    $region32: #{_lambda_.1} parent=1 // pred_region
      %83 = dma.done [#allocation3], 128
    $region33: #{_lambda_.1} parent=1 // pred_fallthru
      _
    // Predicated region
    $region34: #{_lambda_.1} parent=1 // pred_check
      _
    $region35: #{_lambda_.1} parent=1 // pred_check_branch
      %85 = sbr.rel (0) target = $region37
    $region36: #{_lambda_.1} parent=1 // pred_region
      %87 = dma.done [#allocation5], 256
    $region37: #{_lambda_.1} parent=1 // pred_fallthru
      _
    // Predicated region
    $region38: #{_lambda_.1} parent=1 // pred_check
      _
    $region39: #{_lambda_.1} parent=1 // pred_check_branch
      %89 = sbr.rel (0) target = $region41
    $region40: #{_lambda_.1} parent=1 // pred_region
      %91 = dma.done [#allocation5], 2048
    $region41: #{_lambda_.1} parent=1 // pred_fallthru
      _
    // Predicated region
    $region42: #{_lambda_.1} parent=1 // pred_check
      _
    $region43: #{_lambda_.1} parent=1 // pred_check_branch
      %93 = sbr.rel (0) target = $region45
    $region44: #{_lambda_.1} parent=1 // pred_region
      %95 = dma.done [#allocation8], 2048
    $region45: #{_lambda_.1} parent=1 // pred_fallthru
      _
    // Predicated region
    $region46: #{_lambda_.1} parent=1 // pred_check
      _
    $region47: #{_lambda_.1} parent=1 // pred_check_branch
      %97 = sbr.rel (0) target = $region49
    $region48: #{_lambda_.1} parent=1 // pred_region
      %99 = dma.done [#allocation8], 16
    $region49: #{_lambda_.1} parent=1 // pred_fallthru
      _
    %v100 = vld [vmem:[#allocation2] sm:$0xff]
    %v101 = vld [vmem:[#allocation4] sm:$0xff]
    %v102 = vld [vmem:[#allocation4 + $0x8] sm:$0xff]
    %v103 = vld [vmem:[%s2] sm:$0x1]
    %v105 = vperm.slane %v103, 0
    %vm107 = vcmask 130048
    %v109 = vsel %vm107, %v100, 0
    %111 = vmatpush.msra.mxu0 0.0
    %112 = vmatpush.msra.mxu0 0.0
    %113 = vmatpush.msra.mxu0 0.0
    %114 = vmatpush.msra.mxu0 0.0
    %115 = vmatpush.msra.mxu0 0.0
    %116 = vmatpush.msra.mxu0 0.0
    %117 = vmatpush.msra.mxu0 0.0
    %118 = vmatpush.msra.mxu0 0.0
    %119 = vmatpush.msra.mxu0 0.0
    %120 = vmatpush.msra.mxu0 0.0
    %121 = vmatpush.msra.mxu0 0.0
    %122 = vmatpush.msra.mxu0 0.0
    %123 = vmatpush.msra.mxu0 0.0
    %124 = vmatpush.msra.mxu0 0.0
    %125 = vmatpush.msra.mxu0 %v102
    %126 = vmatpush.msra.mxu0 %v101
    %127 = vmatmul.f32.gmra.mxu0 %v109
    %v128 = vpop.f32.mrf.mxu0
    %v129 = vadd.f32 %v105, %v128
    %130 = vdwg.mxu0
    %v131 = vmax.f32 %v129, 0.0
    %v132 = vld [vmem:[#allocation6] sm:$0xff]
    %v133 = vld [vmem:[#allocation6 + $0x8] sm:$0xff]
    %v134 = vld [vmem:[#allocation6 + $0x10] sm:$0xff]
    %v135 = vld [vmem:[#allocation6 + $0x18] sm:$0xff]
    %v136 = vld [vmem:[#allocation6 + $0x20] sm:$0xff]
    %v137 = vld [vmem:[#allocation6 + $0x28] sm:$0xff]
    %v138 = vld [vmem:[#allocation6 + $0x30] sm:$0xff]
    %v139 = vld [vmem:[#allocation6 + $0x38] sm:$0xff]
    %v140 = vld [vmem:[#allocation6 + $0x40] sm:$0xff]
    %v141 = vld [vmem:[#allocation6 + $0x48] sm:$0xff]
    %v142 = vld [vmem:[#allocation6 + $0x50] sm:$0xff]
    %v143 = vld [vmem:[#allocation6 + $0x58] sm:$0xff]
    %v144 = vld [vmem:[#allocation6 + $0x60] sm:$0xff]
    %v145 = vld [vmem:[#allocation6 + $0x68] sm:$0xff]
    %v146 = vld [vmem:[#allocation6 + $0x70] sm:$0xff]
    %v147 = vld [vmem:[#allocation6 + $0x78] sm:$0xff]
    %v148 = vld [vmem:[%s4] sm:$0x1]
    %v150 = vperm.slane %v148, 0
    %152 = vmatpush.msra.mxu0 %v147
    %153 = vmatpush.msra.mxu0 %v146
    %154 = vmatpush.msra.mxu0 %v145
    %155 = vmatpush.msra.mxu0 %v144
    %156 = vmatpush.msra.mxu0 %v143
    %157 = vmatpush.msra.mxu0 %v142
    %158 = vmatpush.msra.mxu0 %v141
    %159 = vmatpush.msra.mxu0 %v140
    %160 = vmatpush.msra.mxu0 %v139
    %161 = vmatpush.msra.mxu0 %v138
    %162 = vmatpush.msra.mxu0 %v137
    %163 = vmatpush.msra.mxu0 %v136
    %164 = vmatpush.msra.mxu0 %v135
    %165 = vmatpush.msra.mxu0 %v134
    %166 = vmatpush.msra.mxu0 %v133
    %167 = vmatpush.msra.mxu0 %v132
    %168 = vmatmul.f32.gmra.mxu0 %v131
    %v169 = vpop.f32.mrf.mxu0
    %v170 = vadd.f32 %v150, %v169
    %171 = vdwg.mxu0
    %v172 = vmax.f32 %v170, 0.0
    %v173 = vld [vmem:[#allocation7] sm:$0xff]
    %v174 = vld [vmem:[#allocation7 + $0x8] sm:$0xff]
    %v175 = vld [vmem:[#allocation7 + $0x10] sm:$0xff]
    %v176 = vld [vmem:[#allocation7 + $0x18] sm:$0xff]
    %v177 = vld [vmem:[#allocation7 + $0x20] sm:$0xff]
    %v178 = vld [vmem:[#allocation7 + $0x28] sm:$0xff]
    %v179 = vld [vmem:[#allocation7 + $0x30] sm:$0xff]
    %v180 = vld [vmem:[#allocation7 + $0x38] sm:$0xff]
    %v181 = vld [vmem:[#allocation7 + $0x40] sm:$0xff]
    %v182 = vld [vmem:[#allocation7 + $0x48] sm:$0xff]
    %v183 = vld [vmem:[#allocation7 + $0x50] sm:$0xff]
    %v184 = vld [vmem:[#allocation7 + $0x58] sm:$0xff]
    %v185 = vld [vmem:[#allocation7 + $0x60] sm:$0xff]
    %v186 = vld [vmem:[#allocation7 + $0x68] sm:$0xff]
    %v187 = vld [vmem:[#allocation7 + $0x70] sm:$0xff]
    %v188 = vld [vmem:[#allocation7 + $0x78] sm:$0xff]
    %v189 = vld [vmem:[#allocation9] sm:$0x1]
    %v191 = vperm.slane %v189, 0
    %193 = vmatpush.msra.mxu0 %v188
    %194 = vmatpush.msra.mxu0 %v187
    %195 = vmatpush.msra.mxu0 %v186
    %196 = vmatpush.msra.mxu0 %v185
    %197 = vmatpush.msra.mxu0 %v184
    %198 = vmatpush.msra.mxu0 %v183
    %199 = vmatpush.msra.mxu0 %v182
    %200 = vmatpush.msra.mxu0 %v181
    %201 = vmatpush.msra.mxu0 %v180
    %202 = vmatpush.msra.mxu0 %v179
    %203 = vmatpush.msra.mxu0 %v178
    %204 = vmatpush.msra.mxu0 %v177
    %205 = vmatpush.msra.mxu0 %v176
    %206 = vmatpush.msra.mxu0 %v175
    %207 = vmatpush.msra.mxu0 %v174
    %208 = vmatpush.msra.mxu0 %v173
    %209 = vmatmul.f32.gmra.mxu0 %v172
    %v210 = vpop.f32.mrf.mxu0
    %v211 = vadd.f32 %v191, %v210
    %212 = vdwg.mxu0
    %vm213 = vcmask 15360
    %214 = vst.msk [vmem:[%s7] sm:$0xff] %vm213, %v211
    // Predicated region
    $region50: #{_lambda_.1} parent=1 // pred_check
      _
    $region51: #{_lambda_.1} parent=1 // pred_check_branch
      %216 = sbr.rel (0) target = $region53
    $region52: #{_lambda_.1} parent=1 // pred_region
      _
    $region53: #{_lambda_.1} parent=1 // pred_fallthru
      _
    // Predicated region
    $region54: #{_lambda_.1} parent=1 // pred_check
      _
    $region55: #{_lambda_.1} parent=1 // pred_check_branch
      %218 = sbr.rel (0) target = $region57
    $region56: #{_lambda_.1} parent=1 // pred_region
      _
    $region57: #{_lambda_.1} parent=1 // pred_fallthru
      _
    %219 = vsyncpa [#allocation3], 1
    %220 = vsyncpa [#allocation5], 1
    %221 = vsyncpa [#allocation8], 1

</llo_original>
